<compile_context>
chip_gen: v6e
topology: v6e:2x2x1
jax: 0.10.0
libtpu: 0.0.40
codegen_flags: <defaults>
</compile_context>

<pallas_src>
import functools
import math

import jax
import jax.numpy as jnp
from jax.experimental import pallas as pl
from jax.experimental.pallas import tpu as pltpu

EPS = 1e-6


def _charbonnier_kernel(x_ref, y_ref, o_ref, *, tm, lanes, steps, valid_rows,
                        needs_mask):
    c = pl.program_id(0)   # parallel (core) axis
    i = pl.program_id(1)   # sequential reduction axis

    @pl.when(i == 0)
    def _():
        o_ref[...] = jnp.zeros_like(o_ref)

    if tm % 8 != 0:
        # Tiny single-block input (block rows not a multiple of the sublane count).  One-off
        # sublane reduce, spread over the 8 output rows (division by 8 is exact in f32; the
        # wrapper's final sum restores the total).
        x = x_ref[...].astype(jnp.float32)
        y = y_ref[...].astype(jnp.float32)
        d = x - y
        err = jnp.sqrt(d * d + jnp.float32(EPS))
        o_ref[...] += err.sum(axis=0, keepdims=True) * jnp.float32(0.125)
        return

    nslabs = tm // 8
    unroll = math.gcd(nslabs, 8)

    def slab_sum(mask_base_row):
        # Stream the (tm, lanes) block one (8, lanes) sublane slab at a time: ~8-16 live vregs,
        # and the full err tile is never materialized in VMEM.
        if mask_base_row is not None:
            sub_iota = jax.lax.broadcasted_iota(jnp.int32, (8, lanes), 0)  # hoisted out of loop

        def body(s, acc):
            r = pl.multiple_of(s * 8, 8)
            xs = x_ref[pl.ds(r, 8), :].astype(jnp.float32)
            ys = y_ref[pl.ds(r, 8), :].astype(jnp.float32)
            d = xs - ys
            e = jnp.sqrt(d * d + jnp.float32(EPS))
            if mask_base_row is not None:
                row_ids = (mask_base_row + r) + sub_iota
                e = jnp.where(row_ids < valid_rows, e, jnp.float32(0.0))
            return acc + e

        return jax.lax.fori_loop(0, nslabs, body,
                                 jnp.zeros((8, lanes), jnp.float32),
                                 unroll=unroll)

    if needs_mask:
        base_row = (c * steps + i) * tm
        is_boundary = base_row + tm > valid_rows

        # Only the boundary (or clamped redundant) block pays the iota/compare/select.
        @pl.when(base_row + tm <= valid_rows)
        def _():
            o_ref[...] += slab_sum(None)

        @pl.when(is_boundary)
        def _():
            o_ref[...] += slab_sum(base_row)
    else:
        o_ref[...] += slab_sum(None)


def l1_charbonnier_loss(x, y, *, tm=2048, lanes=512, cores=2,
                        vmem_limit_bytes=32 * 1024 * 1024):
    """sum(sqrt((x - y)**2 + eps)); accumulation in float32."""
    assert x.shape == y.shape, "X and Y must have the same shape"
    assert tm % 8 == 0 and lanes % 128 == 0

    xf = x.reshape(-1)
    yf = y.reshape(-1)
    n = xf.size

    loss = jnp.float32(0.0)
    rem = n % lanes
    main = n - rem

    if main > 0:
        rows = main // lanes
        x2 = (xf if rem == 0 else xf[:main]).reshape(rows, lanes)
        y2 = (yf if rem == 0 else yf[:main]).reshape(rows, lanes)

        # Block row count: full tile when possible, else the whole (small) array
        # (a block dim equal to the full array dim is always legal).
        tm_eff = tm if rows >= tm else rows
        num_blocks = pl.cdiv(rows, tm_eff)           # total row blocks
        cores_eff = max(1, min(cores, num_blocks))   # don't over-shard tiny inputs
        steps = pl.cdiv(num_blocks, cores_eff)       # sequential steps per core
        needs_mask = (cores_eff * steps * tm_eff != rows)

        kernel = functools.partial(
            _charbonnier_kernel, tm=tm_eff, lanes=lanes, steps=steps,
            valid_rows=rows, needs_mask=needs_mask)

        def in_map(c, i):
            # Clamp so redundant trailing grid cells (num_blocks % cores_eff != 0) re-read a
            # valid block; their contribution is zeroed by the in-kernel row mask.
            return (jnp.minimum(c * steps + i, num_blocks - 1), 0)

        itemsize = jnp.dtype(x.dtype).itemsize
        cost = pl.CostEstimate(
            flops=4 * main,
            transcendentals=main,
            bytes_accessed=2 * main * itemsize + cores_eff * 8 * lanes * 4)

        partials = pl.pallas_call(
            kernel,
            out_shape=jax.ShapeDtypeStruct((cores_eff * 8, lanes), jnp.float32),
            grid=(cores_eff, steps),
            in_specs=[
                pl.BlockSpec((tm_eff, lanes), in_map),
                pl.BlockSpec((tm_eff, lanes), in_map),
            ],
            out_specs=pl.BlockSpec((8, lanes), lambda c, i: (c, 0)),
            compiler_params=pltpu.CompilerParams(
                dimension_semantics=("parallel", "arbitrary"),
                vmem_limit_bytes=vmem_limit_bytes),
            cost_estimate=cost,
        )(x2, y2)

        loss = loss + jnp.sum(partials)

    if rem:
        # Fewer than `lanes` leftover elements: negligible, handled in plain JAX.
        xt = xf[main:].astype(jnp.float32)
        yt = yf[main:].astype(jnp.float32)
        dt = xt - yt
        loss = loss + jnp.sum(jnp.sqrt(dt * dt + jnp.float32(EPS)))

    return loss


if __name__ == "__main__":
    key = jax.random.PRNGKey(0)
    kx, ky = jax.random.split(key)

    def ref_loss(a, b):
        d = a.astype(jnp.float32) - b.astype(jnp.float32)
        return jnp.sum(jnp.sqrt(d * d + jnp.float32(EPS)))

    # Small NCHW inputs matching the PyTorch module (SR vs HR images): tiny <8-row path.
    x = jax.random.normal(kx, (2, 4, 16, 16), dtype=jnp.float32)
    y = jax.random.normal(ky, (2, 4, 16, 16), dtype=jnp.float32)
    loss = jax.block_until_ready(l1_charbonnier_loss(x, y))
    ref = ref_loss(x, y)
    assert jnp.allclose(loss, ref, rtol=2e-5, atol=1e-4), (loss, ref)

    # Ragged shape, default big tile: single-block slab-loop path + <lanes remainder tail.
    x2 = jax.random.normal(kx, (2, 4, 250, 250), dtype=jnp.float32)
    y2 = jax.random.normal(ky, (2, 4, 250, 250), dtype=jnp.float32)
    loss2 = jax.block_until_ready(l1_charbonnier_loss(x2, y2))
    ref2 = ref_loss(x2, y2)
    assert jnp.allclose(loss2, ref2, rtol=2e-5, atol=1e-3), (loss2, ref2)

    # Small explicit tile: multi-block streaming, two-core split, gated boundary mask.
    loss3 = jax.block_until_ready(l1_charbonnier_loss(x2, y2, tm=128))
    assert jnp.allclose(loss3, ref2, rtol=2e-5, atol=1e-3), (loss3, ref2)

    # Tile that leaves a redundant clamped grid cell (3 blocks over 2 cores x 2 steps).
    loss4 = jax.block_until_ready(l1_charbonnier_loss(x2, y2, tm=352))
    assert jnp.allclose(loss4, ref2, rtol=2e-5, atol=1e-3), (loss4, ref2)

    print("KERNEL_OK")
</pallas_src>

<mosaic_0001>
module attributes {stable_mosaic.version = 11 : i64} {
  func.func @_charbonnier_kernel(%arg0: i32, %arg1: i32, %arg2: memref<4x512xf32, #tpu.memory_space<vmem>>, %arg3: memref<4x512xf32, #tpu.memory_space<vmem>>, %arg4: memref<8x512xf32, #tpu.memory_space<vmem>>) attributes {dimension_semantics = [#tpu.dimension_semantics<parallel>, #tpu.dimension_semantics<arbitrary>], iteration_bounds = array<i64: 1, 1>, scalar_prefetch = 0 : i64, scratch_operands = 0 : i64, tpu.core_type = #tpu.core_type<tc>, window_params = [{transform_indices = @transform_0, window_bounds = array<i64: 4, 512>}, {transform_indices = @transform_1, window_bounds = array<i64: 4, 512>}, {transform_indices = @transform_2, window_bounds = array<i64: 8, 512>}]} {
    %c0_i32 = arith.constant 0 : i32
    %0 = arith.cmpi eq, %arg1, %c0_i32 : i32
    %1 = arith.extui %0 : i1 to i32
    %c0_i32_0 = arith.constant 0 : i32
    %2 = arith.cmpi ne, %1, %c0_i32_0 : i32
    scf.if %2 {
      %cst_10 = arith.constant 0.000000e+00 : f32
      %18 = vector.broadcast %cst_10 : f32 to vector<8x512xf32>
      %c0_11 = arith.constant 0 : index
      %c0_12 = arith.constant 0 : index
      %19 = vector.load %arg4[%c0_11, %c0_12] : memref<8x512xf32, #tpu.memory_space<vmem>>, vector<8x512xf32>
      tpu.vector_store %arg4[%c0_11, %c0_12], %18 {strides = array<i32>} : memref<8x512xf32, #tpu.memory_space<vmem>>, vector<8x512xf32>,
    } else {
    }
    %c0 = arith.constant 0 : index
    %c0_1 = arith.constant 0 : index
    %3 = vector.load %arg2[%c0, %c0_1] : memref<4x512xf32, #tpu.memory_space<vmem>>, vector<4x512xf32>
    %c0_2 = arith.constant 0 : index
    %c0_3 = arith.constant 0 : index
    %4 = vector.load %arg3[%c0_2, %c0_3] : memref<4x512xf32, #tpu.memory_space<vmem>>, vector<4x512xf32>
    %5 = arith.subf %3, %4 : vector<4x512xf32>
    %6 = arith.mulf %5, %5 : vector<4x512xf32>
    %cst = arith.constant 9.99999997E-7 : f32
    %7 = vector.broadcast %cst : f32 to vector<4x512xf32>
    %8 = arith.addf %6, %7 : vector<4x512xf32>
    %9 = math.sqrt %8 : vector<4x512xf32>
    %c0_4 = arith.constant 0 : index
    %c0_5 = arith.constant 0 : index
    %10 = vector.load %arg4[%c0_4, %c0_5] : memref<8x512xf32, #tpu.memory_space<vmem>>, vector<8x512xf32>
    %cst_6 = arith.constant dense<0.000000e+00> : vector<512xf32>
    %11 = vector.multi_reduction <add>, %9, %cst_6 [0] : vector<4x512xf32> to vector<512xf32>
    %12 = vector.shape_cast %11 : vector<512xf32> to vector<1x512xf32>
    %cst_7 = arith.constant 1.250000e-01 : f32
    %13 = vector.broadcast %cst_7 : f32 to vector<1x512xf32>
    %14 = arith.mulf %12, %13 : vector<1x512xf32>
    %15 = vector.broadcast %14 : vector<1x512xf32> to vector<8x512xf32>
    %16 = arith.addf %10, %15 : vector<8x512xf32>
    %c0_8 = arith.constant 0 : index
    %c0_9 = arith.constant 0 : index
    %17 = vector.load %arg4[%c0_8, %c0_9] : memref<8x512xf32, #tpu.memory_space<vmem>>, vector<8x512xf32>
    tpu.vector_store %arg4[%c0_8, %c0_9], %16 {strides = array<i32>} : memref<8x512xf32, #tpu.memory_space<vmem>>, vector<8x512xf32>,
    return
  }
  func.func @transform_0(%arg0: i32, %arg1: i32) -> (i32, i32) {
    %c1_i32 = arith.constant 1 : i32
    %0 = arith.muli %arg0, %c1_i32 : i32
    %1 = arith.addi %0, %arg1 : i32
    %c0_i32 = arith.constant 0 : i32
    %2 = arith.minsi %1, %c0_i32 : i32
    %c0_i32_0 = arith.constant 0 : i32
    %c0_i32_1 = arith.constant 0 : i32
    return %2, %c0_i32_0 : i32, i32
  }
  func.func @transform_1(%arg0: i32, %arg1: i32) -> (i32, i32) {
    %c1_i32 = arith.constant 1 : i32
    %0 = arith.muli %arg0, %c1_i32 : i32
    %1 = arith.addi %0, %arg1 : i32
    %c0_i32 = arith.constant 0 : i32
    %2 = arith.minsi %1, %c0_i32 : i32
    %c0_i32_0 = arith.constant 0 : i32
    %c0_i32_1 = arith.constant 0 : i32
    return %2, %c0_i32_0 : i32, i32
  }
  func.func @transform_2(%arg0: i32, %arg1: i32) -> (i32, i32) {
    %c0_i32 = arith.constant 0 : i32
    %c0_i32_0 = arith.constant 0 : i32
    return %arg0, %c0_i32 : i32, i32
  }
}

</mosaic_0001>

<llo_original>
// kernel: tpu_custom_call.1
$region0: #{tpu_custom_call.1}
  #allocation0 [shape = 'u32[]', space=smem, size = 0x4, offset = 0x4, fixed_abs, tag = 'smem constant byte address 0x4 - core index']
  #allocation1 [shape = 'u32[144,128]{1,0:T(1,128)}', space=vmem, size = 0x12000, scoped, tag = 'internal scratch']
  %s0 = inlined_call_operand.hbm [shape: f32[4,512], index: 0, kind: input, shape index: {}]
  %s1 = inlined_call_operand.hbm [shape: f32[4,512], index: 1, kind: input, shape index: {}]
  %s2 = inlined_call_operand.hbm [shape: f32[8,512], index: 2, kind: output, shape index: {}]
  %s3 = sld [smem:[#allocation0]]
  $region30: #{tpu_custom_call.1} parent=0
    _
  %s5 = ssub.s32 1, %s3
  %s6 = scalar_select 0, %s5, %s3
  $region1: #{tpu_custom_call.1} parent=0
    #allocation2 [shape = 'u8[8192]{0}', space=vmem, size = 0x2000, scoped, tag = 'input window, operand 0, single buffered']
    #allocation3 [shape = 's32[1]{0}', space=sflag, size = 0x4, scoped, tag = 'scoped memory for tpu_custom_call.1']
    #allocation4 [shape = 's32[1]{0}', space=sflag, size = 0x4, scoped, tag = 'scoped memory for tpu_custom_call.1']
    #allocation5 [shape = 'u8[8192]{0}', space=vmem, size = 0x2000, scoped, tag = 'input window, operand 1, single buffered']
    #allocation6 [shape = 's32[1]{0}', space=sflag, size = 0x4, scoped, tag = 'scoped memory for tpu_custom_call.1']
    #allocation7 [shape = 'u8[16384]{0}', space=vmem, size = 0x4000, scoped, tag = 'output window, operand 0, single buffered']
    %7 = vsyncpa [#allocation3], 0
    %8 = vsyncpa [#allocation6], 0
    %9 = vsyncpa [#allocation4], 0
    // Predicated region
    $region2: #{tpu_custom_call.1} parent=1 // pred_check
      _
    $region3: #{tpu_custom_call.1} parent=1 // pred_check_branch
      %11 = sbr.rel (0) target = $region5
    $region4: #{tpu_custom_call.1} parent=1 // pred_region
      %s12 = sadd.s32 0, 0
      %p13 = scmp.lt.s32.totalorder %s12, 0
      %s14 = scalar_select %p13, %s12, 0
      %s16 = ssub.s32 256, 256
      %17 = vsyncadd [#allocation3], %s16
      %s18 = smul.addr %s14, 4
      %s19 = smul.addr %s18, 64
      %s20 = scalar_lea.hbm %s0, %s19
      %s22 = sshll.u32 [#allocation2], 4
      %s23 = int_to_ptr.vmem [resolvable:$true] %s22
      %25 = dma.hbm_to_vmem [thread:$0]  %s20, 256, %s23, [#allocation3]
    $region5: #{tpu_custom_call.1} parent=1 // pred_fallthru
      _
    // Predicated region
    $region6: #{tpu_custom_call.1} parent=1 // pred_check
      _
    $region7: #{tpu_custom_call.1} parent=1 // pred_check_branch
      %27 = sbr.rel (0) target = $region9
    $region8: #{tpu_custom_call.1} parent=1 // pred_region
      %s28 = sadd.s32 0, 0
      %p29 = scmp.lt.s32.totalorder %s28, 0
      %s30 = scalar_select %p29, %s28, 0
      %s32 = ssub.s32 256, 256
      %33 = vsyncadd [#allocation6], %s32
      %s34 = smul.addr %s30, 4
      %s35 = smul.addr %s34, 64
      %s36 = scalar_lea.hbm %s1, %s35
      %s38 = sshll.u32 [#allocation5], 4
      %s39 = int_to_ptr.vmem [resolvable:$true] %s38
      %41 = dma.hbm_to_vmem [thread:$0]  %s36, 256, %s39, [#allocation6]
    $region9: #{tpu_custom_call.1} parent=1 // pred_fallthru
      _
    // Predicated region
    $region10: #{tpu_custom_call.1} parent=1 // pred_check
      _
    $region11: #{tpu_custom_call.1} parent=1 // pred_check_branch
      %43 = sbr.rel (0) target = $region13
    $region12: #{tpu_custom_call.1} parent=1 // pred_region
      %44 = dma.done [#allocation3], 256
    $region13: #{tpu_custom_call.1} parent=1 // pred_fallthru
      _
    // Predicated region
    $region14: #{tpu_custom_call.1} parent=1 // pred_check
      _
    $region15: #{tpu_custom_call.1} parent=1 // pred_check_branch
      %46 = sbr.rel (0) target = $region17
    $region16: #{tpu_custom_call.1} parent=1 // pred_region
      %47 = dma.done [#allocation6], 256
    $region17: #{tpu_custom_call.1} parent=1 // pred_fallthru
      _
    %s48 = sadd.s32 0, 0
    %p49 = scmp.lt.s32.totalorder %s48, 0
    %s50 = scalar_select %p49, %s48, 0
    %s51 = sadd.s32 0, 0
    %p52 = scmp.lt.s32.totalorder %s51, 0
    %s53 = scalar_select %p52, %s51, 0
    %p54 = scmp.eq.s32.totalorder 0, 0
    // Predicated region
    $region18: #{tpu_custom_call.1} parent=1 // pred_check
      %p55 = pneg %p54
    $region19: #{tpu_custom_call.1} parent=1 // pred_check_branch
      %57 = sbr.rel (%p55) target = $region21
    $region20: #{tpu_custom_call.1} parent=1 // pred_region
      %58 = vst [vmem:[#allocation7] sm:$0xff] 0.0
      %59 = vst [vmem:[#allocation7 + $0x8] sm:$0xff] 0.0
      %60 = vst [vmem:[#allocation7 + $0x10] sm:$0xff] 0.0
      %61 = vst [vmem:[#allocation7 + $0x18] sm:$0xff] 0.0
    $region21: #{tpu_custom_call.1} parent=1 // pred_fallthru
      _
    %v62 = vld [vmem:[#allocation2] sm:$0xff]
    %v63 = vld [vmem:[#allocation2 + $0x8] sm:$0xff]
    %v64 = vld [vmem:[#allocation5] sm:$0xff]
    %v65 = vld [vmem:[#allocation5 + $0x8] sm:$0xff]
    %v66 = vsub.f32 %v62, %v64
    %v67 = vsub.f32 %v63, %v65
    %v68 = vmul.f32 %v66, %v66
    %v69 = vmul.f32 %v67, %v67
    %v70 = vadd.f32 %v68, 1e-06
    %v71 = vadd.f32 %v69, 1e-06
    %v72 = vrsqrt.pop %v70
    %v73 = vmul.f32 %v70, %v72
    %vm74 = vcmp.eq.f32.partialorder %v70, inf
    %v75 = vsel %vm74, %v70, %v73
    %vm76 = vcmp.eq.f32.partialorder %v70, 0.0
    %v77 = vand.u32 %v70, 2147483648
    %v78 = vsel %vm76, %v77, %v75
    %v79 = vrsqrt.pop %v71
    %v80 = vmul.f32 %v71, %v79
    %vm81 = vcmp.eq.f32.partialorder %v71, inf
    %v82 = vsel %vm81, %v71, %v80
    %vm83 = vcmp.eq.f32.partialorder %v71, 0.0
    %v84 = vand.u32 %v71, 2147483648
    %v85 = vsel %vm83, %v84, %v82
    %v86 = vld [vmem:[#allocation7] sm:$0xff]
    %v87 = vld [vmem:[#allocation7 + $0x8] sm:$0xff]
    %v88 = vld [vmem:[#allocation7 + $0x10] sm:$0xff]
    %v89 = vld [vmem:[#allocation7 + $0x18] sm:$0xff]
    %v92 = vcombine.high %v78, %v78
    %v93 = vcombine.high %v85, %v85
    %vm96 = vcmask 1043456
    %v97 = vsel %vm96, %v78, 0.0
    %v98 = vrot.slane %v97, 4
    %v99 = vadd.f32 %v97, %v98
    %v100 = vrot.slane %v99, 2
    %v101 = vadd.f32 %v99, %v100
    %v102 = vrot.slane %v101, 1
    %v103 = vadd.f32 %v101, %v102
    %v104 = vsel %vm96, %v92, 0.0
    %v105 = vrot.slane %v104, 4
    %v106 = vadd.f32 %v104, %v105
    %v107 = vrot.slane %v106, 2
    %v108 = vadd.f32 %v106, %v107
    %v109 = vrot.slane %v108, 1
    %v110 = vadd.f32 %v108, %v109
    %v111 = vsel %vm96, %v85, 0.0
    %v112 = vrot.slane %v111, 4
    %v113 = vadd.f32 %v111, %v112
    %v114 = vrot.slane %v113, 2
    %v115 = vadd.f32 %v113, %v114
    %v116 = vrot.slane %v115, 1
    %v117 = vadd.f32 %v115, %v116
    %v118 = vsel %vm96, %v93, 0.0
    %v119 = vrot.slane %v118, 4
    %v120 = vadd.f32 %v118, %v119
    %v121 = vrot.slane %v120, 2
    %v122 = vadd.f32 %v120, %v121
    %v123 = vrot.slane %v122, 1
    %v124 = vadd.f32 %v122, %v123
    %v125 = vmul.f32 %v103, 0.125
    %v126 = vmul.f32 %v110, 0.125
    %v127 = vmul.f32 %v117, 0.125
    %v128 = vmul.f32 %v124, 0.125
    %v129 = vadd.f32 %v86, %v125
    %v130 = vadd.f32 %v87, %v126
    %v131 = vadd.f32 %v88, %v127
    %v132 = vadd.f32 %v89, %v128
    %133 = vst [vmem:[#allocation7] sm:$0xff] %v129
    %134 = vst [vmem:[#allocation7 + $0x8] sm:$0xff] %v130
    %135 = vst [vmem:[#allocation7 + $0x10] sm:$0xff] %v131
    %136 = vst [vmem:[#allocation7 + $0x18] sm:$0xff] %v132
    // Predicated region
    $region22: #{tpu_custom_call.1} parent=1 // pred_check
      _
    $region23: #{tpu_custom_call.1} parent=1 // pred_check_branch
      %138 = sbr.rel (0) target = $region25
    $region24: #{tpu_custom_call.1} parent=1 // pred_region
      %s140 = ssub.s32 512, 512
      %141 = vsyncadd [#allocation4], %s140
      %s143 = sshll.u32 [#allocation7], 4
      %s144 = int_to_ptr.vmem [resolvable:$true] %s143
      %146 = dma.vmem_to_hbm [thread:$0]  %s144, 512, %s2, [#allocation4]
    $region25: #{tpu_custom_call.1} parent=1 // pred_fallthru
      _
    // Predicated region
    $region26: #{tpu_custom_call.1} parent=1 // pred_check
      _
    $region27: #{tpu_custom_call.1} parent=1 // pred_check_branch
      %148 = sbr.rel (0) target = $region29
    $region28: #{tpu_custom_call.1} parent=1 // pred_region
      %149 = dma.done [#allocation4], 512
    $region29: #{tpu_custom_call.1} parent=1 // pred_fallthru
      _
    %150 = vsyncpa [#allocation3], 1
    %151 = vsyncpa [#allocation6], 1
    %152 = vsyncpa [#allocation4], 1

</llo_original>
